<compile_context>
chip_gen: v7x
topology: tpu7x:2x2x1
jax: 0.10.0
libtpu: 0.0.40
codegen_flags: <defaults>
</compile_context>

<pallas_src>
import math
from functools import partial

import jax
import jax.numpy as jnp
from jax.experimental import pallas as pl
from jax.experimental.pallas import tpu as pltpu

LN_EPS = 1e-5            # torch.nn.LayerNorm default eps
NEG_BIG = -1e9           # finite "masked" sentinel (keeps softmax NaN-free)


def _layer_norm(x, gamma, beta):
    # x: (R, D) f32; gamma/beta: (1, D). Biased variance, like torch LayerNorm.
    mu = jnp.mean(x, axis=-1, keepdims=True)
    var = jnp.mean((x - mu) ** 2, axis=-1, keepdims=True)
    return (x - mu) * jax.lax.rsqrt(var + LN_EPS) * gamma + beta


# ----------------------------------------------------------------------------
# Kernel 1: input projection on the (B*S, d_in) slab
#   out  = LayerNorm(ReLU(x @ W + b))                       (B*S, D)
#   bias = lane-dense additive key-padding rows             (B, 1, S)
# ----------------------------------------------------------------------------
def input_proj_kernel(x_ref, w_ref, b_ref, g_ref, be_ref, o_ref, bias_ref,
                      *, padding_idx, B, S):
    x = x_ref[...]                                                     # (B*S, Din) f32
    # bf16 operands, f32 accumulation (note: slightly different rounding than a
    # pure-f32 torch matmul; the padding mask below is computed from THIS
    # kernel's own LN output, so it stays self-consistent).
    y = jnp.dot(x.astype(jnp.bfloat16), w_ref[...],
                preferred_element_type=jnp.float32) + b_ref[...]
    y = jnp.maximum(y, 0.0)                                            # ReLU (dropout = id)
    y = _layer_norm(y, g_ref[...], be_ref[...])
    o_ref[...] = y.astype(o_ref.dtype)

    # Lane-dense additive mask rows: rowsum laid out on the LANE axis via a
    # ones(1,D) matmul against y[b] (contract D) -> (1, S).  Avoids (S,1)
    # partial stores and the host-side where.
    ones_row = jnp.ones((1, y.shape[1]), jnp.float32)
    for b in range(B):
        yb = y[b * S:(b + 1) * S]                                      # (S, D) sublane slice
        rs = jax.lax.dot_general(ones_row, yb, (((1,), (1,)), ((), ())),
                                 preferred_element_type=jnp.float32)   # (1, S)
        bias_ref[b] = jnp.where(rs == float(padding_idx),
                                NEG_BIG, 0.0).astype(jnp.float32)


def input_projection(x2, fc_w, fc_b, ln_g, ln_b, padding_idx, B, S):
    BS, Din = x2.shape
    D = fc_w.shape[1]
    # No grid: whole (small) slab resident in VMEM.
    # TODO(synk): tile the row axis for large B*S.
    return pl.pallas_call(
        partial(input_proj_kernel, padding_idx=padding_idx, B=B, S=S),
        out_shape=(jax.ShapeDtypeStruct((BS, D), jnp.float32),
                   jax.ShapeDtypeStruct((B, 1, S), jnp.float32)),
    )(x2, fc_w, fc_b, ln_g, ln_b)


# ----------------------------------------------------------------------------
# Kernel 2: ALL N encoder layers fused, grid=(N,), (B*S, D) VMEM-resident carry.
# Weights are streamed from HBM exactly once per layer.
# ----------------------------------------------------------------------------
_STACK_ORDER = ["wq", "bq", "wk", "bk", "wv", "bv", "wo", "bo",
                "ln1_g", "ln1_b", "w1", "b1", "w2", "b2", "ln2_g", "ln2_b"]


def fused_layers_kernel(x_ref, bias_ref,
                        wq_ref, bq_ref, wk_ref, bk_ref, wv_ref, bv_ref,
                        wo_ref, bo_ref, g1_ref, be1_ref,
                        w1_ref, b1_ref, w2_ref, b2_ref, g2_ref, be2_ref,
                        o_ref, carry_ref, *, h, d_k, d_v, B, S):
    n = pl.program_id(0)

    # Load the post-input-projection activation only on layer 0; afterwards the
    # running activation lives in VMEM scratch (no HBM round-trip per layer).
    @pl.when(n == 0)
    def _():
        carry_ref[...] = x_ref[...]

    x = carry_ref[...]                                                 # (B*S, D) f32
    bias3 = bias_ref[...]                                              # (B, 1, S): 0 / -1e9

    # ---- Multi-head attention (softmax scale pre-folded into Wq/bq) ---------
    xb = x.astype(jnp.bfloat16)
    q = jnp.dot(xb, wq_ref[0], preferred_element_type=jnp.float32) + bq_ref[0]
    k = jnp.dot(xb, wk_ref[0], preferred_element_type=jnp.float32) + bk_ref[0]
    v = jnp.dot(xb, wv_ref[0], preferred_element_type=jnp.float32) + bv_ref[0]
    qb = q.astype(jnp.bfloat16)
    kb = k.astype(jnp.bfloat16)
    vb = v.astype(jnp.bfloat16)
    wo = wo_ref[0]                                                     # (h*d_v, D) bf16

    # Per head: batched-over-B einsums (flash-style layout); the output
    # projection is accumulated per head (== einsum('hqv,hvd->qd') unrolled),
    # so concat(heads) is never materialized.
    att_acc = jnp.zeros((B * S, x.shape[1]), jnp.float32)
    for hh in range(h):
        qh = qb[:, hh * d_k:(hh + 1) * d_k].reshape(B, S, d_k)
        kh = kb[:, hh * d_k:(hh + 1) * d_k].reshape(B, S, d_k)
        vh = vb[:, hh * d_v:(hh + 1) * d_v].reshape(B, S, d_v)
        s = jnp.einsum('bqd,bkd->bqk', qh, kh,
                       preferred_element_type=jnp.float32)             # (B, S, S)
        s = s + bias3                                                  # additive key mask
        m = jnp.max(s, axis=-1, keepdims=True)
        e = jnp.exp(s - m)
        p = e * pl.reciprocal(jnp.sum(e, axis=-1, keepdims=True), approx=True)
        ctx = jnp.einsum('bqk,bkd->bqd', p.astype(jnp.bfloat16), vh,
                         preferred_element_type=jnp.float32)           # (B, S, d_v)
        att_acc = att_acc + jnp.dot(
            ctx.reshape(B * S, d_v).astype(jnp.bfloat16),
            wo[hh * d_v:(hh + 1) * d_v, :],
            preferred_element_type=jnp.float32)                        # (B*S, D)

    att_out = att_acc + bo_ref[0]
    a = _layer_norm(x + att_out, g1_ref[0], be1_ref[0])                # residual + LN

    # ---- Position-wise feed-forward ------------------------------------------
    ab = a.astype(jnp.bfloat16)
    ff = jnp.dot(ab, w1_ref[0], preferred_element_type=jnp.float32) + b1_ref[0]
    ff = jnp.maximum(ff, 0.0)
    ff = jnp.dot(ff.astype(jnp.bfloat16), w2_ref[0],
                 preferred_element_type=jnp.float32) + b2_ref[0]
    out = _layer_norm(a + ff, g2_ref[0], be2_ref[0])

    carry_ref[...] = out
    o_ref[...] = out.reshape(B, 1, S, -1).astype(o_ref.dtype)


def _fused_vmem_limit(B, S, D, stacked):
    # Double-buffered input blocks + output block + carry scratch + headroom
    # for in-kernel temporaries.  Kept well below v7x's 64 MiB physical VMEM.
    n_bytes = 2 * (B * S * D * 4)              # initial activation block
    n_bytes += 2 * (B * 1 * S * 4)             # additive mask block
    for name in _STACK_ORDER:
        a = stacked[name]
        n_bytes += 2 * int(a.shape[1]) * int(a.shape[2]) * a.dtype.itemsize
    n_bytes += 2 * (B * 1 * S * D * 4)         # output block
    n_bytes += B * S * D * 4                   # carry scratch
    return int(min(n_bytes + (16 << 20), 32 << 20))


def encoder_layers(x2, bias_rows, stacked, h, d_k, d_v, B, S):
    BS, D = x2.shape
    N = stacked["wq"].shape[0]

    def weight_spec(arr):
        shp = arr.shape
        return pl.BlockSpec((1, shp[1], shp[2]), lambda n: (n, 0, 0))

    in_specs = ([pl.BlockSpec((BS, D), lambda n: (0, 0)),              # initial act
                 pl.BlockSpec((B, 1, S), lambda n: (0, 0, 0))]         # additive mask
                + [weight_spec(stacked[name]) for name in _STACK_ORDER])
    args = [x2, bias_rows] + [stacked[name] for name in _STACK_ORDER]

    return pl.pallas_call(
        partial(fused_layers_kernel, h=h, d_k=d_k, d_v=d_v, B=B, S=S),
        out_shape=jax.ShapeDtypeStruct((B, N, S, D), jnp.float32),
        grid=(N,),
        in_specs=in_specs,
        out_specs=pl.BlockSpec((B, 1, S, D), lambda n: (0, n, 0, 0)),
        scratch_shapes=[pltpu.VMEM((BS, D), jnp.float32)],             # layer carry
        compiler_params=pltpu.CompilerParams(
            dimension_semantics=("arbitrary",),                        # carry across layers
            vmem_limit_bytes=_fused_vmem_limit(B, S, D, stacked)),
    )(*args)


# ----------------------------------------------------------------------------
# Parameter init (deterministic, synthetic) + full forward
# ----------------------------------------------------------------------------
def init_params(key, N, d_in, d_model, d_k, d_v, h, d_ff):
    cnt = [0]

    def nxt():
        cnt[0] += 1
        return jax.random.fold_in(key, cnt[0])

    def w(shape, scale=0.05):
        return jax.random.normal(nxt(), shape, jnp.float32) * scale

    HK, HV = h * d_k, h * d_v
    inv_sqrt_dk = 1.0 / math.sqrt(d_k)       # softmax scale folded into Wq/bq once
    params = {
        "fc_w": w((d_in, d_model)).astype(jnp.bfloat16),
        "fc_b": w((1, d_model)),
        "ln_g": jnp.ones((1, d_model), jnp.float32),
        "ln_b": jnp.zeros((1, d_model), jnp.float32),
        # Per-layer weights stacked along a leading N axis; matmul weights bf16.
        "stacked": {
            "wq": (w((N, d_model, HK)) * inv_sqrt_dk).astype(jnp.bfloat16),
            "bq": w((N, 1, HK)) * inv_sqrt_dk,
            "wk": w((N, d_model, HK)).astype(jnp.bfloat16),
            "bk": w((N, 1, HK)),
            "wv": w((N, d_model, HV)).astype(jnp.bfloat16),
            "bv": w((N, 1, HV)),
            "wo": w((N, HV, d_model)).astype(jnp.bfloat16),
            "bo": w((N, 1, d_model)),
            "ln1_g": jnp.ones((N, 1, d_model), jnp.float32),
            "ln1_b": jnp.zeros((N, 1, d_model), jnp.float32),
            "w1": w((N, d_model, d_ff)).astype(jnp.bfloat16),
            "b1": w((N, 1, d_ff)),
            "w2": w((N, d_ff, d_model)).astype(jnp.bfloat16),
            "b2": w((N, 1, d_model)),
            "ln2_g": jnp.ones((N, 1, d_model), jnp.float32),
            "ln2_b": jnp.zeros((N, 1, d_model), jnp.float32),
        },
    }
    return params


def memory_augmented_encoder(x, params, padding_idx, h, d_k, d_v):
    B, S, d_in = x.shape
    x2 = x.reshape(B * S, d_in)                                        # fold batch into rows
    # fc -> ReLU -> (dropout=id) -> LayerNorm; lane-dense additive mask rows.
    out2, bias_rows = input_projection(x2, params["fc_w"], params["fc_b"],
                                       params["ln_g"], params["ln_b"],
                                       padding_idx, B, S)
    attention_mask = (bias_rows != 0.0)[:, :, None, :]                 # (B,1,1,S) bool

    # All N encoder layers in one fused pallas_call; stacked output built in-kernel.
    outs = encoder_layers(out2, bias_rows, params["stacked"],
                          h, d_k, d_v, B, S)                           # (B,N,S,D)
    return outs, attention_mask


if __name__ == "__main__":
    # Small but lane-dense shapes consistent with the module (scaled-down).
    B, S, d_in, d_model = 2, 16, 64, 128
    h, d_k, d_v, d_ff, N = 4, 32, 32, 128, 2
    padding_idx = 0

    key = jax.random.PRNGKey(0)
    kx, kp = jax.random.split(key)
    x = jax.random.normal(kx, (B, S, d_in), jnp.float32)
    params = init_params(kp, N, d_in, d_model, d_k, d_v, h, d_ff)

    outs, attention_mask = memory_augmented_encoder(x, params, padding_idx, h, d_k, d_v)
    jax.block_until_ready((outs, attention_mask))
    assert outs.shape == (B, N, S, d_model)
    assert attention_mask.shape == (B, 1, 1, S)
    assert bool(jnp.all(jnp.isfinite(outs)))
    print("KERNEL_OK")
</pallas_src>

<mosaic_0001>
module attributes {stable_mosaic.version = 11 : i64} {
  func.func @input_proj_kernel(%arg0: memref<32x64xf32, #tpu.memory_space<vmem>>, %arg1: memref<64x128xbf16, #tpu.memory_space<vmem>>, %arg2: memref<1x128xf32, #tpu.memory_space<vmem>>, %arg3: memref<1x128xf32, #tpu.memory_space<vmem>>, %arg4: memref<1x128xf32, #tpu.memory_space<vmem>>, %arg5: memref<32x128xf32, #tpu.memory_space<vmem>>, %arg6: memref<2x1x16xf32, #tpu.memory_space<vmem>>) attributes {dimension_semantics = [], scalar_prefetch = 0 : i64, scratch_operands = 0 : i64, tpu.core_type = #tpu.core_type<tc>} {
    %c0 = arith.constant 0 : index
    %c0_0 = arith.constant 0 : index
    %0 = vector.load %arg0[%c0, %c0_0] : memref<32x64xf32, #tpu.memory_space<vmem>>, vector<32x64xf32>
    %1 = arith.truncf %0 : vector<32x64xf32> to vector<32x64xbf16>
    %c0_1 = arith.constant 0 : index
    %c0_2 = arith.constant 0 : index
    %2 = vector.load %arg1[%c0_1, %c0_2] : memref<64x128xbf16, #tpu.memory_space<vmem>>, vector<64x128xbf16>
    %cst = arith.constant dense<0.000000e+00> : vector<32x128xf32>
    %3 = tpu.matmul %1, %2, %cst {dimension_numbers = #tpu.dot_dimension_numbers<[1], [0], [0], [1], [0, 0, 1, 1], [], []>} : vector<32x64xbf16>, vector<64x128xbf16>, vector<32x128xf32> -> vector<32x128xf32>
    %c0_3 = arith.constant 0 : index
    %c0_4 = arith.constant 0 : index
    %4 = vector.load %arg2[%c0_3, %c0_4] : memref<1x128xf32, #tpu.memory_space<vmem>>, vector<1x128xf32>
    %5 = vector.broadcast %4 : vector<1x128xf32> to vector<32x128xf32>
    %6 = arith.addf %3, %5 : vector<32x128xf32>
    %cst_5 = arith.constant 0.000000e+00 : f32
    %7 = vector.broadcast %cst_5 : f32 to vector<32x128xf32>
    %8 = arith.maximumf %6, %7 : vector<32x128xf32>
    %c0_6 = arith.constant 0 : index
    %c0_7 = arith.constant 0 : index
    %9 = vector.load %arg3[%c0_6, %c0_7] : memref<1x128xf32, #tpu.memory_space<vmem>>, vector<1x128xf32>
    %c0_8 = arith.constant 0 : index
    %c0_9 = arith.constant 0 : index
    %10 = vector.load %arg4[%c0_8, %c0_9] : memref<1x128xf32, #tpu.memory_space<vmem>>, vector<1x128xf32>
    %cst_10 = arith.constant dense<0.000000e+00> : vector<32xf32>
    %11 = vector.multi_reduction <add>, %8, %cst_10 [1] : vector<32x128xf32> to vector<32xf32>
    %12 = vector.shape_cast %11 : vector<32xf32> to vector<32x1xf32>
    %cst_11 = arith.constant 1.280000e+02 : f32
    %13 = vector.broadcast %cst_11 : f32 to vector<32x1xf32>
    %14 = arith.divf %12, %13 : vector<32x1xf32>
    %15 = vector.broadcast %14 : vector<32x1xf32> to vector<32x128xf32>
    %16 = arith.subf %8, %15 : vector<32x128xf32>
    %17 = arith.mulf %16, %16 : vector<32x128xf32>
    %cst_12 = arith.constant dense<0.000000e+00> : vector<32xf32>
    %18 = vector.multi_reduction <add>, %17, %cst_12 [1] : vector<32x128xf32> to vector<32xf32>
    %19 = vector.shape_cast %18 : vector<32xf32> to vector<32x1xf32>
    %cst_13 = arith.constant 1.280000e+02 : f32
    %20 = vector.broadcast %cst_13 : f32 to vector<32x1xf32>
    %21 = arith.divf %19, %20 : vector<32x1xf32>
    %22 = vector.broadcast %14 : vector<32x1xf32> to vector<32x128xf32>
    %23 = arith.subf %8, %22 : vector<32x128xf32>
    %cst_14 = arith.constant 9.99999974E-6 : f32
    %24 = vector.broadcast %cst_14 : f32 to vector<32x1xf32>
    %25 = arith.addf %21, %24 : vector<32x1xf32>
    %26 = math.rsqrt %25 : vector<32x1xf32>
    %27 = vector.broadcast %26 : vector<32x1xf32> to vector<32x128xf32>
    %28 = arith.mulf %23, %27 : vector<32x128xf32>
    %29 = vector.broadcast %9 : vector<1x128xf32> to vector<32x128xf32>
    %30 = arith.mulf %28, %29 : vector<32x128xf32>
    %31 = vector.broadcast %10 : vector<1x128xf32> to vector<32x128xf32>
    %32 = arith.addf %30, %31 : vector<32x128xf32>
    %c0_15 = arith.constant 0 : index
    %c0_16 = arith.constant 0 : index
    %33 = vector.load %arg5[%c0_15, %c0_16] : memref<32x128xf32, #tpu.memory_space<vmem>>, vector<32x128xf32>
    tpu.vector_store %arg5[%c0_15, %c0_16], %32 {strides = array<i32>} : memref<32x128xf32, #tpu.memory_space<vmem>>, vector<32x128xf32>,
    %cst_17 = arith.constant 1.000000e+00 : f32
    %34 = vector.broadcast %cst_17 : f32 to vector<1x128xf32>
    %35 = vector.extract_strided_slice %32 {offsets = [0, 0], sizes = [16, 128], strides = [1, 1]} : vector<32x128xf32> to vector<16x128xf32>
    %cst_18 = arith.constant dense<0.000000e+00> : vector<1x16xf32>
    %36 = tpu.matmul %34, %35, %cst_18 {dimension_numbers = #tpu.dot_dimension_numbers<[1], [1], [0], [0], [0, 0, 1, 0], [], []>} : vector<1x128xf32>, vector<16x128xf32>, vector<1x16xf32> -> vector<1x16xf32>
    %cst_19 = arith.constant 0.000000e+00 : f32
    %37 = vector.broadcast %cst_19 : f32 to vector<1x16xf32>
    %38 = arith.cmpf oeq, %36, %37 : vector<1x16xf32>
    %cst_20 = arith.constant -1.000000e+09 : f32
    %cst_21 = arith.constant 0.000000e+00 : f32
    %39 = vector.broadcast %cst_20 : f32 to vector<1x16xf32>
    %40 = vector.broadcast %cst_21 : f32 to vector<1x16xf32>
    %41 = arith.select %38, %39, %40 : vector<1x16xi1>, vector<1x16xf32>
    %c0_22 = arith.constant 0 : index
    %c0_23 = arith.constant 0 : index
    %c0_24 = arith.constant 0 : index
    %42 = vector.load %arg6[%c0_22, %c0_23, %c0_24] : memref<2x1x16xf32, #tpu.memory_space<vmem>>, vector<1x1x16xf32>
    %43 = vector.shape_cast %42 : vector<1x1x16xf32> to vector<1x16xf32>
    %44 = vector.shape_cast %41 : vector<1x16xf32> to vector<1x1x16xf32>
    tpu.vector_store %arg6[%c0_22, %c0_23, %c0_24], %44 {strides = array<i32>} : memref<2x1x16xf32, #tpu.memory_space<vmem>>, vector<1x1x16xf32>,
    %45 = vector.extract_strided_slice %32 {offsets = [16, 0], sizes = [16, 128], strides = [1, 1]} : vector<32x128xf32> to vector<16x128xf32>
    %cst_25 = arith.constant dense<0.000000e+00> : vector<1x16xf32>
    %46 = tpu.matmul %34, %45, %cst_25 {dimension_numbers = #tpu.dot_dimension_numbers<[1], [1], [0], [0], [0, 0, 1, 0], [], []>} : vector<1x128xf32>, vector<16x128xf32>, vector<1x16xf32> -> vector<1x16xf32>
    %cst_26 = arith.constant 0.000000e+00 : f32
    %47 = vector.broadcast %cst_26 : f32 to vector<1x16xf32>
    %48 = arith.cmpf oeq, %46, %47 : vector<1x16xf32>
    %cst_27 = arith.constant -1.000000e+09 : f32
    %cst_28 = arith.constant 0.000000e+00 : f32
    %49 = vector.broadcast %cst_27 : f32 to vector<1x16xf32>
    %50 = vector.broadcast %cst_28 : f32 to vector<1x16xf32>
    %51 = arith.select %48, %49, %50 : vector<1x16xi1>, vector<1x16xf32>
    %c1 = arith.constant 1 : index
    %c0_29 = arith.constant 0 : index
    %c0_30 = arith.constant 0 : index
    %52 = vector.load %arg6[%c1, %c0_29, %c0_30] : memref<2x1x16xf32, #tpu.memory_space<vmem>>, vector<1x1x16xf32>
    %53 = vector.shape_cast %52 : vector<1x1x16xf32> to vector<1x16xf32>
    %54 = vector.shape_cast %51 : vector<1x16xf32> to vector<1x1x16xf32>
    tpu.vector_store %arg6[%c1, %c0_29, %c0_30], %54 {strides = array<i32>} : memref<2x1x16xf32, #tpu.memory_space<vmem>>, vector<1x1x16xf32>,
    return
  }
}

</mosaic_0001>

<llo_original>
// kernel: tpu_custom_call.1
$region0: #{tpu_custom_call.1}
  #allocation0 [shape = 'u32[]', space=smem, size = 0x4, offset = 0x4, fixed_abs, tag = 'smem constant byte address 0x4 - core index']
  #allocation1 [shape = 'u32[144,128]{1,0:T(1,128)}', space=vmem, size = 0x12000, scoped, tag = 'internal scratch']
  %s0 = inlined_call_operand.hbm [shape: f32[32,64], index: 0, kind: input, shape index: {}]
  %s1 = inlined_call_operand.hbm [shape: bf16[64,128], index: 1, kind: input, shape index: {}]
  %s2 = inlined_call_operand.vmem [shape: f32[1,128], index: 2, kind: input, shape index: {}]
  %s3 = inlined_call_operand.vmem [shape: f32[1,128], index: 3, kind: input, shape index: {}]
  %s4 = inlined_call_operand.vmem [shape: f32[1,128], index: 4, kind: input, shape index: {}]
  %s5 = inlined_call_operand.hbm [shape: f32[32,128], index: 5, kind: output, shape index: {0}]
  %s6 = inlined_call_operand.hbm [shape: f32[2,1,16], index: 6, kind: output, shape index: {1}]
  %7 = xla_tuple %s5, %s6
  %s8 = sld [smem:[#allocation0]]
  $region46: #{tpu_custom_call.1} parent=0
    _
  %s10 = ssub.s32 1, %s8
  %s11 = scalar_select 0, %s10, %s8
  $region1: #{tpu_custom_call.1} parent=0
    #allocation2 [shape = 'u8[16384]{0}', space=vmem, size = 0x4000, scoped, tag = 'input window, operand 0, single buffered']
    #allocation3 [shape = 's32[1]{0}', space=sflag, size = 0x4, scoped, tag = 'scoped memory for tpu_custom_call.1']
    #allocation4 [shape = 's32[1]{0}', space=sflag, size = 0x4, scoped, tag = 'scoped memory for tpu_custom_call.1']
    #allocation5 [shape = 'u8[16384]{0}', space=vmem, size = 0x4000, scoped, tag = 'input window, operand 1, single buffered']
    #allocation6 [shape = 's32[1]{0}', space=sflag, size = 0x4, scoped, tag = 'scoped memory for tpu_custom_call.1']
    #allocation7 [shape = 'u8[16384]{0}', space=vmem, size = 0x4000, scoped, tag = 'output window, operand 0, single buffered']
    #allocation8 [shape = 'u8[1024]{0}', space=vmem, size = 0x400, scoped, tag = 'output window, operand 1, single buffered']
    #allocation9 [shape = 's32[1]{0}', space=sflag, size = 0x4, scoped, tag = 'scoped memory for tpu_custom_call.1']
    %12 = vsyncpa [#allocation3], 0
    %13 = vsyncpa [#allocation6], 0
    %14 = vsyncpa [#allocation4], 0
    %15 = vsyncpa [#allocation9], 0
    // Predicated region
    $region2: #{tpu_custom_call.1} parent=1 // pred_check
      _
    $region3: #{tpu_custom_call.1} parent=1 // pred_check_branch
      %17 = sbr.rel (0) target = $region5
    $region4: #{tpu_custom_call.1} parent=1 // pred_region
      %s19 = ssub.s32 512, 512
      %20 = vsyncadd [#allocation3], %s19
      %s21 = sshll.u32 [#allocation2], 4
      %s22 = int_to_ptr.vmem [resolvable:$true] %s21
      %27 = dma.hbm_to_vmem [thread:$0]  %s0, 512, %s22, [#allocation3], 128, 128, 8
    $region5: #{tpu_custom_call.1} parent=1 // pred_fallthru
      _
    // Predicated region
    $region6: #{tpu_custom_call.1} parent=1 // pred_check
      _
    $region7: #{tpu_custom_call.1} parent=1 // pred_check_branch
      %29 = sbr.rel (0) target = $region9
    $region8: #{tpu_custom_call.1} parent=1 // pred_region
      %s31 = ssub.s32 512, 512
      %32 = vsyncadd [#allocation6], %s31
      %s33 = sshll.u32 [#allocation5], 4
      %s34 = int_to_ptr.vmem [resolvable:$true] %s33
      %39 = dma.hbm_to_vmem [thread:$0]  %s1, 512, %s34, [#allocation6], 64, 64, 4
    $region9: #{tpu_custom_call.1} parent=1 // pred_fallthru
      _
    // Predicated region
    $region10: #{tpu_custom_call.1} parent=1 // pred_check
      _
    $region11: #{tpu_custom_call.1} parent=1 // pred_check_branch
      %41 = sbr.rel (0) target = $region13
    $region12: #{tpu_custom_call.1} parent=1 // pred_region
      _
    $region13: #{tpu_custom_call.1} parent=1 // pred_fallthru
      _
    // Predicated region
    $region14: #{tpu_custom_call.1} parent=1 // pred_check
      _
    $region15: #{tpu_custom_call.1} parent=1 // pred_check_branch
      %43 = sbr.rel (0) target = $region17
    $region16: #{tpu_custom_call.1} parent=1 // pred_region
      _
    $region17: #{tpu_custom_call.1} parent=1 // pred_fallthru
      _
    // Predicated region
    $region18: #{tpu_custom_call.1} parent=1 // pred_check
      _
    $region19: #{tpu_custom_call.1} parent=1 // pred_check_branch
      %45 = sbr.rel (0) target = $region21
    $region20: #{tpu_custom_call.1} parent=1 // pred_region
      _
    $region21: #{tpu_custom_call.1} parent=1 // pred_fallthru
      _
    // Predicated region
    $region22: #{tpu_custom_call.1} parent=1 // pred_check
      _
    $region23: #{tpu_custom_call.1} parent=1 // pred_check_branch
      %47 = sbr.rel (0) target = $region25
    $region24: #{tpu_custom_call.1} parent=1 // pred_region
      %48 = dma.done [#allocation3], 512
    $region25: #{tpu_custom_call.1} parent=1 // pred_fallthru
      _
    // Predicated region
    $region26: #{tpu_custom_call.1} parent=1 // pred_check
      _
    $region27: #{tpu_custom_call.1} parent=1 // pred_check_branch
      %50 = sbr.rel (0) target = $region29
    $region28: #{tpu_custom_call.1} parent=1 // pred_region
      %51 = dma.done [#allocation6], 512
    $region29: #{tpu_custom_call.1} parent=1 // pred_fallthru
      _
    %v53 = vld [vmem:[#allocation2] sm:$0xff]
    %v54 = vld [vmem:[#allocation2 + $0x8] sm:$0xff]
    %v55 = vld [vmem:[#allocation2 + $0x10] sm:$0xff]
    %v56 = vld [vmem:[#allocation2 + $0x18] sm:$0xff]
    %v57 = vpack.c.bf16 %v54, %v53
    %v58 = vpack.c.bf16 %v56, %v55
    %v59 = vld [vmem:[#allocation5] sm:$0xf]
    %v60 = vld [vmem:[#allocation5 + $0x4] sm:$0xf]
    %v61 = vld [vmem:[#allocation5 + $0x8] sm:$0xf]
    %v62 = vld [vmem:[#allocation5 + $0xc] sm:$0xf]
    %v63 = vld [vmem:[#allocation5 + $0x10] sm:$0xf]
    %v64 = vld [vmem:[#allocation5 + $0x14] sm:$0xf]
    %v65 = vld [vmem:[#allocation5 + $0x18] sm:$0xf]
    %v66 = vld [vmem:[#allocation5 + $0x1c] sm:$0xf]
    %v67 = vld [vmem:[%s2] sm:$0x1]
    %v69 = vlaneseq
    %v70 = vshrl.u32 %v69, 7
    %v71 = vsub.s32 0, %v70
    %v72 = vrot.slane %v67, %v71
    %v82 = vunpack.c.l.b16 %v59
    %v83 = vunpack.c.l.b16 %v60
    %v84 = vunpack.c.l.b16 %v61
    %v85 = vunpack.c.l.b16 %v62
    %v86 = vunpack.c.l.b16 %v63
    %v87 = vunpack.c.l.b16 %v64
    %v88 = vunpack.c.l.b16 %v65
    %v89 = vunpack.c.l.b16 %v66
    %v90 = vpack.c.b16 %v83, %v82
    %v91 = vpack.c.b16 %v85, %v84
    %v92 = vpack.c.b16 %v87, %v86
    %v93 = vpack.c.b16 %v89, %v88
    %vm98 = vcmask 523264
    %v100 = vsel %vm98, %v57, 0
    %v103 = vsel %vm98, %v58, 0
    %105 = vmatprep.subr.bf16.mxu0 0
    %106 = vmatpush1.bf16.msra.mxu0 %v90
    %107 = vmatprep.subr.bf16.mxu0 0
    %108 = vmatpush1.bf16.msra.mxu0 %v91
    %109 = vmatprep.subr.bf16.mxu0 0
    %110 = vmatpush1.bf16.msra.mxu0 %v92
    %111 = vmatprep.subr.bf16.mxu0 0
    %112 = vmatpush1.bf16.msra.mxu0 %v93
    %113 = vmatprep.subr.bf16.mxu0 0
    %114 = vmatpush1.bf16.msra.mxu0 0
    %115 = vmatprep.subr.bf16.mxu0 0
    %116 = vmatpush1.bf16.msra.mxu0 0
    %117 = vmatprep.subr.bf16.mxu0 0
    %118 = vmatpush1.bf16.msra.mxu0 0
    %119 = vmatprep.subr.bf16.mxu0 0
    %120 = vmatpush1.bf16.msra.mxu0 0
    %121 = vmatprep.subr.bf16.mxu0 0
    %122 = vmatpush1.bf16.msra.mxu0 0
    %123 = vmatprep.subr.bf16.mxu0 0
    %124 = vmatpush1.bf16.msra.mxu0 0
    %125 = vmatprep.subr.bf16.mxu0 0
    %126 = vmatpush1.bf16.msra.mxu0 0
    %127 = vmatprep.subr.bf16.mxu0 0
    %128 = vmatpush1.bf16.msra.mxu0 0
    %129 = vmatprep.subr.bf16.mxu0 0
    %130 = vmatpush1.bf16.msra.mxu0 0
    %131 = vmatprep.subr.bf16.mxu0 0
    %132 = vmatpush1.bf16.msra.mxu0 0
    %133 = vmatprep.subr.bf16.mxu0 0
    %134 = vmatpush1.bf16.msra.mxu0 0
    %135 = vmatprep.subr.bf16.mxu0 0
    %136 = vmatpush1.bf16.msra.mxu0 0
    %137 = vmatprep.mubr.bf16.mxu0 0
    %138 = vmatmul.mubr.bf16.gmra.mrb[0].mxu0 %v100
    %v139 = vpop.f32.mrb[0].mxu0
    %v140 = vadd.f32 %v72, %v139
    %v141 = vpop.f32.mrb[0].mxu0
    %v142 = vpop.f32.mrb[0].mxu0
    %v143 = vadd.f32 %v72, %v142
    %v144 = vpop.f32.mrb[0].mxu0
    %145 = vmatprep.mubr.bf16.mxu0 0
    %146 = vmatmul.mubr.bf16.gmra.mrb[0].mxu0 %v103
    %v147 = vpop.f32.mrb[0].mxu0
    %v148 = vadd.f32 %v72, %v147
    %v149 = vpop.f32.mrb[0].mxu0
    %v150 = vpop.f32.mrb[0].mxu0
    %v151 = vadd.f32 %v72, %v150
    %v152 = vpop.f32.mrb[0].mxu0
    %153 = vdwg.mxu0
    %v154 = vmax.f32 %v140, 0.0
    %v155 = vmax.f32 %v143, 0.0
    %v156 = vmax.f32 %v148, 0.0
    %v157 = vmax.f32 %v151, 0.0
    %v158 = vld [vmem:[%s3] sm:$0x1]
    %v159 = vld [vmem:[%s4] sm:$0x1]
    %160 = vadd.xlane.f32.xlu0 %v154
    %v161 = vpop.xlane.xlu0 %160
    %162 = vadd.xlane.f32.xlu0 %v155
    %v163 = vpop.xlane.xlu0 %162
    %164 = vadd.xlane.f32.xlu0 %v156
    %v165 = vpop.xlane.xlu0 %164
    %166 = vadd.xlane.f32.xlu0 %v157
    %v167 = vpop.xlane.xlu0 %166
    %v168 = vrcp.pop 128.0
    %v169 = vmul.f32 %v161, %v168
    %v170 = vmul.f32 %v163, %v168
    %v171 = vmul.f32 %v165, %v168
    %v172 = vmul.f32 %v167, %v168
    %v173 = vsub.f32 %v154, %v169
    %v174 = vsub.f32 %v155, %v170
    %v175 = vsub.f32 %v156, %v171
    %v176 = vsub.f32 %v157, %v172
    %v177 = vmul.f32 %v173, %v173
    %v178 = vmul.f32 %v174, %v174
    %v179 = vmul.f32 %v175, %v175
    %v180 = vmul.f32 %v176, %v176
    %181 = vadd.xlane.f32.xlu0 %v177
    %v182 = vpop.xlane.xlu0 %181
    %183 = vadd.xlane.f32.xlu0 %v178
    %v184 = vpop.xlane.xlu0 %183
    %185 = vadd.xlane.f32.xlu0 %v179
    %v186 = vpop.xlane.xlu0 %185
    %187 = vadd.xlane.f32.xlu0 %v180
    %v188 = vpop.xlane.xlu0 %187
    %v189 = vmul.f32 %v182, %v168
    %v190 = vmul.f32 %v184, %v168
    %v191 = vmul.f32 %v186, %v168
    %v192 = vmul.f32 %v188, %v168
    %v193 = vadd.f32 %v189, 1e-05
    %v194 = vadd.f32 %v190, 1e-05
    %v195 = vadd.f32 %v191, 1e-05
    %v196 = vadd.f32 %v192, 1e-05
    %v197 = vrsqrt.pop %v193
    %v198 = vrsqrt.pop %v194
    %v199 = vrsqrt.pop %v195
    %v200 = vrsqrt.pop %v196
    %v201 = vmul.f32 %v173, %v197
    %v202 = vmul.f32 %v174, %v198
    %v203 = vmul.f32 %v175, %v199
    %v204 = vmul.f32 %v176, %v200
    %v206 = vlaneseq
    %v207 = vshrl.u32 %v206, 7
    %v208 = vsub.s32 0, %v207
    %v209 = vrot.slane %v158, %v208
    %v211 = vmul.f32 %v201, %v209
    %v212 = vmul.f32 %v202, %v209
    %v213 = vmul.f32 %v203, %v209
    %v214 = vmul.f32 %v204, %v209
    %v216 = vlaneseq
    %v217 = vshrl.u32 %v216, 7
    %v218 = vsub.s32 0, %v217
    %v219 = vrot.slane %v159, %v218
    %v221 = vadd.f32 %v211, %v219
    %v222 = vadd.f32 %v212, %v219
    %v223 = vadd.f32 %v213, %v219
    %v224 = vadd.f32 %v214, %v219
    %225 = vst [vmem:[#allocation7] sm:$0xff] %v221
    %226 = vst [vmem:[#allocation7 + $0x8] sm:$0xff] %v222
    %227 = vst [vmem:[#allocation7 + $0x10] sm:$0xff] %v223
    %228 = vst [vmem:[#allocation7 + $0x18] sm:$0xff] %v224
    %229 = vmatprep.subr.mxu0 0.0
    %230 = vmatpush1.xpose.msra.mxu0 %v221
    %231 = vmatprep.subr.mxu0 0.0
    %232 = vmatpush1.xpose.msra.mxu0 %v222
    %233 = vmatprep.subr.mxu0 0.0
    %234 = vmatpush1.xpose.msra.mxu0 0.0
    %235 = vmatprep.subr.mxu0 0.0
    %236 = vmatpush1.xpose.msra.mxu0 0.0
    %237 = vmatprep.subr.mxu0 0.0
    %238 = vmatpush1.xpose.msra.mxu0 0.0
    %239 = vmatprep.subr.mxu0 0.0
    %240 = vmatpush1.xpose.msra.mxu0 0.0
    %241 = vmatprep.subr.mxu0 0.0
    %242 = vmatpush1.xpose.msra.mxu0 0.0
    %243 = vmatprep.subr.mxu0 0.0
    %244 = vmatpush1.xpose.msra.mxu0 0.0
    %245 = vmatprep.subr.mxu0 0.0
    %246 = vmatpush1.xpose.msra.mxu0 0.0
    %247 = vmatprep.subr.mxu0 0.0
    %248 = vmatpush1.xpose.msra.mxu0 0.0
    %249 = vmatprep.subr.mxu0 0.0
    %250 = vmatpush1.xpose.msra.mxu0 0.0
    %251 = vmatprep.subr.mxu0 0.0
    %252 = vmatpush1.xpose.msra.mxu0 0.0
    %253 = vmatprep.subr.mxu0 0.0
    %254 = vmatpush1.xpose.msra.mxu0 0.0
    %255 = vmatprep.subr.mxu0 0.0
    %256 = vmatpush1.xpose.msra.mxu0 0.0
    %257 = vmatprep.subr.mxu0 0.0
    %258 = vmatpush1.xpose.msra.mxu0 0.0
    %259 = vmatprep.subr.mxu0 0.0
    %260 = vmatpush1.xpose.msra.mxu0 0.0
    %261 = vmatprep.subr.mxu0 0.0
    %262 = vmatpush1.xpose.msra.mxu0 0.0
    %263 = vmatprep.subr.mxu0 0.0
    %264 = vmatpush1.xpose.msra.mxu0 0.0
    %265 = vmatprep.subr.mxu0 0.0
    %266 = vmatpush1.xpose.msra.mxu0 0.0
    %267 = vmatprep.subr.mxu0 0.0
    %268 = vmatpush1.xpose.msra.mxu0 0.0
    %269 = vmatprep.subr.mxu0 0.0
    %270 = vmatpush1.xpose.msra.mxu0 0.0
    %271 = vmatprep.subr.mxu0 0.0
    %272 = vmatpush1.xpose.msra.mxu0 0.0
    %273 = vmatprep.subr.mxu0 0.0
    %274 = vmatpush1.xpose.msra.mxu0 0.0
    %275 = vmatprep.subr.mxu0 0.0
    %276 = vmatpush1.xpose.msra.mxu0 0.0
    %277 = vmatprep.subr.mxu0 0.0
    %278 = vmatpush1.xpose.msra.mxu0 0.0
    %279 = vmatprep.subr.mxu0 0.0
    %280 = vmatpush1.xpose.msra.mxu0 0.0
    %281 = vmatprep.subr.mxu0 0.0
    %282 = vmatpush1.xpose.msra.mxu0 0.0
    %283 = vmatprep.subr.mxu0 0.0
    %284 = vmatpush1.xpose.msra.mxu0 0.0
    %285 = vmatprep.subr.mxu0 0.0
    %286 = vmatpush1.xpose.msra.mxu0 0.0
    %287 = vmatprep.subr.mxu0 0.0
    %288 = vmatpush1.xpose.msra.mxu0 0.0
    %289 = vmatprep.subr.mxu0 0.0
    %290 = vmatpush1.xpose.msra.mxu0 0.0
    %291 = vmatprep.subr.mxu0 0.0
    %292 = vmatpush1.xpose.msra.mxu0 0.0
    %293 = vmatprep.mubr.f32.mxu0 0.0
    %294 = vmatmul.mubr.f32.gmra.mrb[0].mxu0 1.0
    %v295 = vpop.f32.mrb[0].mxu0
    %v296 = vadd.f32 0.0, %v295
    %v297 = vpop.f32.mrb[0].mxu0
    %298 = vdwg.mxu0
    %vm299 = vcmp.eq.f32.partialorder %v296, 0.0
    %v300 = vsel %vm299, -1e+09, 0.0
    %vm301 = vcmask 122880
    %302 = vst.msk [vmem:[#allocation8] sm:$0x1] %vm301, %v300
    %303 = vmatprep.subr.mxu0 0.0
    %304 = vmatpush1.xpose.msra.mxu0 %v223
    %305 = vmatprep.subr.mxu0 0.0
    %306 = vmatpush1.xpose.msra.mxu0 %v224
    %307 = vmatprep.subr.mxu0 0.0
    %308 = vmatpush1.xpose.msra.mxu0 0.0
    %309 = vmatprep.subr.mxu0 0.0
    %310 = vmatpush1.xpose.msra.mxu0 0.0
    %311 = vmatprep.subr.mxu0 0.0
    %312 = vmatpush1.xpose.msra.mxu0 0.0
    %313 = vmatprep.subr.mxu0 0.0
    %314 = vmatpush1.xpose.msra.mxu0 0.0
    %315 = vmatprep.subr.mxu0 0.0
    %316 = vmatpush1.xpose.msra.mxu0 0.0
    %317 = vmatprep.subr.mxu0 0.0
    %318 = vmatpush1.xpose.msra.mxu0 0.0
    %319 = vmatprep.subr.mxu0 0.0
    %320 = vmatpush1.xpose.msra.mxu0 0.0
    %321 = vmatprep.subr.mxu0 0.0
    %322 = vmatpush1.xpose.msra.mxu0 0.0
    %323 = vmatprep.subr.mxu0 0.0
    %324 = vmatpush1.xpose.msra.mxu0 0.0
    %325 = vmatprep.subr.mxu0 0.0
    %326 = vmatpush1.xpose.msra.mxu0 0.0
    %327 = vmatprep.subr.mxu0 0.0
    %328 = vmatpush1.xpose.msra.mxu0 0.0
    %329 = vmatprep.subr.mxu0 0.0
    %330 = vmatpush1.xpose.msra.mxu0 0.0
    %331 = vmatprep.subr.mxu0 0.0
    %332 = vmatpush1.xpose.msra.mxu0 0.0
    %333 = vmatprep.subr.mxu0 0.0
    %334 = vmatpush1.xpose.msra.mxu0 0.0
    %335 = vmatprep.subr.mxu0 0.0
    %336 = vmatpush1.xpose.msra.mxu0 0.0
    %337 = vmatprep.subr.mxu0 0.0
    %338 = vmatpush1.xpose.msra.mxu0 0.0
    %339 = vmatprep.subr.mxu0 0.0
    %340 = vmatpush1.xpose.msra.mxu0 0.0
    %341 = vmatprep.subr.mxu0 0.0
    %342 = vmatpush1.xpose.msra.mxu0 0.0
    %343 = vmatprep.subr.mxu0 0.0
    %344 = vmatpush1.xpose.msra.mxu0 0.0
    %345 = vmatprep.subr.mxu0 0.0
    %346 = vmatpush1.xpose.msra.mxu0 0.0
    %347 = vmatprep.subr.mxu0 0.0
    %348 = vmatpush1.xpose.msra.mxu0 0.0
    %349 = vmatprep.subr.mxu0 0.0
    %350 = vmatpush1.xpose.msra.mxu0 0.0
    %351 = vmatprep.subr.mxu0 0.0
    %352 = vmatpush1.xpose.msra.mxu0 0.0
    %353 = vmatprep.subr.mxu0 0.0
    %354 = vmatpush1.xpose.msra.mxu0 0.0
    %355 = vmatprep.subr.mxu0 0.0
    %356 = vmatpush1.xpose.msra.mxu0 0.0
    %357 = vmatprep.subr.mxu0 0.0
    %358 = vmatpush1.xpose.msra.mxu0 0.0
    %359 = vmatprep.subr.mxu0 0.0
    %360 = vmatpush1.xpose.msra.mxu0 0.0
    %361 = vmatprep.subr.mxu0 0.0
    %362 = vmatpush1.xpose.msra.mxu0 0.0
    %363 = vmatprep.subr.mxu0 0.0
    %364 = vmatpush1.xpose.msra.mxu0 0.0
    %365 = vmatprep.subr.mxu0 0.0
    %366 = vmatpush1.xpose.msra.mxu0 0.0
    %367 = vmatprep.mubr.f32.mxu0 0.0
    %368 = vmatmul.mubr.f32.gmra.mrb[0].mxu0 1.0
    %v369 = vpop.f32.mrb[0].mxu0
    %v370 = vadd.f32 0.0, %v369
    %v371 = vpop.f32.mrb[0].mxu0
    %372 = vdwg.mxu0
    %vm373 = vcmp.eq.f32.partialorder %v370, 0.0
    %v374 = vsel %vm373, -1e+09, 0.0
    %s375 = scalar_lea.vmem [#allocation8], 1
    %376 = vst.msk [vmem:[%s375] sm:$0x1] %vm301, %v374
    // Predicated region
    $region30: #{tpu_custom_call.1} parent=1 // pred_check
      _
    $region31: #{tpu_custom_call.1} parent=1 // pred_check_branch
      %378 = sbr.rel (0) target = $region33
    $region32: #{tpu_custom_call.1} parent=1 // pred_region
      %s380 = ssub.s32 512, 512
      %381 = vsyncadd [#allocation4], %s380
      %s382 = sshll.u32 [#allocation7], 4
      %s383 = int_to_ptr.vmem [resolvable:$true] %s382
      %388 = dma.vmem_to_hbm [thread:$0]  %s383, 512, %s5, [#allocation4], 128, 128, 8
    $region33: #{tpu_custom_call.1} parent=1 // pred_fallthru
      _
    // Predicated region
    $region34: #{tpu_custom_call.1} parent=1 // pred_check
      _
    $region35: #{tpu_custom_call.1} parent=1 // pred_check_branch
      %390 = sbr.rel (0) target = $region37
    $region36: #{tpu_custom_call.1} parent=1 // pred_region
      %s392 = ssub.s32 32, 32
      %393 = vsyncadd [#allocation9], %s392
      %s394 = sshll.u32 [#allocation8], 4
      %s395 = int_to_ptr.vmem [resolvable:$true] %s394
      %400 = dma.vmem_to_hbm [thread:$0]  %s395, 32, %s6, [#allocation9], 16, 16, 1
    $region37: #{tpu_custom_call.1} parent=1 // pred_fallthru
      _
    // Predicated region
    $region38: #{tpu_custom_call.1} parent=1 // pred_check
      _
    $region39: #{tpu_custom_call.1} parent=1 // pred_check_branch
      %402 = sbr.rel (0) target = $region41
    $region40: #{tpu_custom_call.1} parent=1 // pred_region
      %403 = dma.done [#allocation4], 512
    $region41: #{tpu_custom_call.1} parent=1 // pred_fallthru
      _
    // Predicated region
    $region42: #{tpu_custom_call.1} parent=1 // pred_check
      _
    $region43: #{tpu_custom_call.1} parent=1 // pred_check_branch
      %405 = sbr.rel (0) target = $region45
    $region44: #{tpu_custom_call.1} parent=1 // pred_region
      %406 = dma.done [#allocation9], 32
    $region45: #{tpu_custom_call.1} parent=1 // pred_fallthru
      _
    %407 = vsyncpa [#allocation3], 1
    %408 = vsyncpa [#allocation6], 1
    %409 = vsyncpa [#allocation4], 1
    %410 = vsyncpa [#allocation9], 1

</llo_original>
